<compile_context>
chip_gen: v6e
topology: v6e:2x2x1
jax: 0.10.0
libtpu: 0.0.40
codegen_flags: <defaults>
</compile_context>

<pallas_src>
import functools

import jax
import jax.numpy as jnp
from jax.experimental import pallas as pl
from jax.experimental.pallas import tpu as pltpu

_EPS_NORM = 1e-15    # geoopt clamp_min on norms
_EPS_ATANH = 1e-5    # geoopt artanh input clamp (float32)


def _artanh(x):
    # artanh via the log formula; only applied to small lane-dense per-row arrays.
    x = jnp.clip(x, -1.0 + _EPS_ATANH, 1.0 - _EPS_ATANH)
    return 0.5 * jnp.log((1.0 + x) / (1.0 - x))


def _hyperbolic_act_kernel(x_ref, o_ref, *, sqrt_neg_k, lane_fold):
    x = x_ref[...].astype(jnp.float32)
    relu_x = jnp.maximum(x, 0.0)

    # Per-row sums of squares of x and relu(x); shape (row_tile, 1).
    ss_x = jnp.sum(x * x, axis=-1, keepdims=True)
    ss_r = jnp.sum(relu_x * relu_x, axis=-1, keepdims=True)

    rows = x.shape[0]
    if lane_fold:
        # Relayout the per-row scalars to a lane-dense (rows//128, 128) shape so
        # every op of the transcendental chain below touches 128x fewer vregs.
        ss_x = ss_x.reshape(rows // 128, 128)
        ss_r = ss_r.reshape(rows // 128, 128)

    eps2 = _EPS_NORM * _EPS_NORM              # clamp ss at eps^2 == clamp norm at eps
    ss_x = jnp.maximum(ss_x, eps2)
    ss_r = jnp.maximum(ss_r, eps2)

    rinv_x = jax.lax.rsqrt(ss_x)              # 1 / max(||x||, eps)         (EUP)
    rinv_r = jax.lax.rsqrt(ss_r)              # 1 / max(||relu(x)||, eps)   (EUP)
    r_x = ss_x * rinv_x                       # max(||x||, eps)
    r_r = ss_r * rinv_r                       # max(||relu(x)||, eps)

    # k == -1.0 is the common case: skip the sqrt(-k) scalings entirely.
    u = r_x * sqrt_neg_k if sqrt_neg_k != 1.0 else r_x        # sk * ||x||
    # arg = artanh(sk*||x||) * ||relu(x)|| / ||x||   (the sk in s cancels here)
    arg = _artanh(u) * (rinv_x * r_r)
    scale = jnp.tanh(arg) * rinv_r                             # tanh(arg)/||relu(x)||
    if sqrt_neg_k != 1.0:
        scale = scale * (1.0 / sqrt_neg_k)                     # ... / (sk*||relu(x)||)

    if lane_fold:
        scale = scale.reshape(rows, 1)

    o_ref[...] = (relu_x * scale).astype(o_ref.dtype)


def _tpu_params():
    """Best-effort chip introspection; conservative fallbacks if queries fail."""
    kind = ""
    try:
        kind = jax.devices()[0].device_kind.lower()
    except Exception:
        pass
    is_v7 = "v7" in kind
    try:
        vmem_cap = int(pltpu.get_tpu_info().vmem_capacity_bytes)
    except Exception:
        vmem_cap = (64 if is_v7 else 128) * 1024 * 1024
    # v7x has two TensorCores per chip (and only 64 MiB VMEM per TC); v5e/v6e: one TC.
    n_cores = 2 if is_v7 else 1
    if is_v7:
        ws_budget = 16 * 1024 * 1024
        vmem_limit = 48 * 1024 * 1024
    else:
        ws_budget = min(vmem_cap // 4, 28 * 1024 * 1024)
        vmem_limit = min(vmem_cap // 2, 64 * 1024 * 1024)
    return ws_budget, vmem_limit, n_cores


def _choose_row_tile(rows, d, itemsize, ws_budget, n_cores):
    # Packed-sublane multiple of the storage dtype: 8 (f32), 16 (bf16), 32 (i8/fp8).
    sublane = max(8, 32 // max(itemsize, 1))
    # Steady-state VMEM bytes per tile row: double-buffered input + output tiles in
    # the storage dtype plus ~3 tile-sized f32 temporaries inside the kernel.
    per_row = (4 * itemsize + 3 * 4) * d
    tile = ws_budget // max(per_row, 1)
    tile = min(tile, 8192, rows)
    if n_cores > 1 and rows > sublane:
        # Guarantee >= n_cores grid steps so the "parallel" axis feeds every TC.
        tile = min(tile, max(pl.cdiv(rows, n_cores), sublane))
    if tile >= 128:
        tile = (tile // 128) * 128            # enables lane-dense per-row scalar path
    elif rows > sublane:
        tile = max(sublane, (tile // sublane) * sublane)
    else:
        tile = rows                            # tiny input: one full block
    return int(tile)


def hyperbolic_activation(x, k=-1.0, row_tile=None):
    """x: (..., D). Returns expmap0(relu(logmap0(x, k)), k). Requires k < 0."""
    assert k < 0.0, "hyperbolic curvature must be negative"
    sqrt_neg_k = float((-k) ** 0.5)

    orig_shape = x.shape
    D = int(orig_shape[-1])
    rows = 1
    for s in orig_shape[:-1]:
        rows *= int(s)
    x2 = x.reshape(rows, D)

    itemsize = jnp.dtype(x.dtype).itemsize
    ws_budget, vmem_limit, n_cores = _tpu_params()
    if row_tile is None:
        row_tile = _choose_row_tile(rows, D, itemsize, ws_budget, n_cores)
    row_tile = int(min(row_tile, rows))

    grid = (pl.cdiv(rows, row_tile),)          # ragged last block masked by Pallas
    lane_fold = (row_tile % 128 == 0)

    # TODO(synk): when D % 128 != 0 (lane-sparse masked stores) fold rows onto the
    # lane axis (or fuse a D-pad into the producer) instead of accepting vst.msk.

    def _run(fold):
        kernel = functools.partial(
            _hyperbolic_act_kernel, sqrt_neg_k=sqrt_neg_k, lane_fold=fold)
        return pl.pallas_call(
            kernel,
            out_shape=jax.ShapeDtypeStruct((rows, D), x.dtype),
            grid_spec=pltpu.PrefetchScalarGridSpec(
                num_scalar_prefetch=0,
                grid=grid,
                in_specs=[pl.BlockSpec((row_tile, D), lambda i: (i, 0))],
                out_specs=pl.BlockSpec((row_tile, D), lambda i: (i, 0)),
            ),
            compiler_params=pltpu.CompilerParams(
                dimension_semantics=("parallel",),
                vmem_limit_bytes=vmem_limit,
            ),
            cost_estimate=pl.CostEstimate(
                flops=8 * rows * D,
                transcendentals=4 * rows,
                bytes_accessed=2 * rows * D * itemsize,
            ),
        )(x2)

    if lane_fold:
        try:
            out = _run(True)
        except Exception:
            # Lowering fallback only: identical math, lane-sparse per-row scalars.
            out = _run(False)
    else:
        out = _run(False)
    return out.reshape(orig_shape)


def _reference(x, k=-1.0):
    # pure-JAX reference of the same math (sanity check)
    sk = jnp.sqrt(-k)
    xn = jnp.maximum(jnp.linalg.norm(x, axis=-1, keepdims=True), _EPS_NORM)
    t = jnp.clip(xn * sk, -1.0 + _EPS_ATANH, 1.0 - _EPS_ATANH)
    tangent = (x / xn) * (jnp.arctanh(t) / sk)
    act = jax.nn.relu(tangent)
    an = jnp.maximum(jnp.linalg.norm(act, axis=-1, keepdims=True), _EPS_NORM)
    return (act / an) * (jnp.tanh(an * sk) / sk)


if __name__ == "__main__":
    key = jax.random.PRNGKey(0)

    # Case 1: small lane-dense shape (B, S, D) = (2, 8, 128), f32, k = -1.
    B, S, D = 2, 8, 128
    x = jax.random.normal(key, (B, S, D), dtype=jnp.float32)
    x = 0.5 * x / jnp.linalg.norm(x, axis=-1, keepdims=True)   # inside the ball
    out = jax.block_until_ready(hyperbolic_activation(x, k=-1.0))
    assert out.shape == x.shape and out.dtype == x.dtype
    assert jnp.allclose(out, _reference(x, k=-1.0), atol=1e-5, rtol=1e-5)

    # Case 2: ragged row count (exercises the cdiv partial-block path), k != -1.
    x2 = jax.random.normal(jax.random.PRNGKey(1), (3, 5, 128), dtype=jnp.float32)
    x2 = 0.4 * x2 / jnp.linalg.norm(x2, axis=-1, keepdims=True)
    out2 = jax.block_until_ready(hyperbolic_activation(x2, k=-2.0))
    assert jnp.allclose(out2, _reference(x2, k=-2.0), atol=1e-5, rtol=1e-5)

    # Case 3: enough rows that row_tile % 128 == 0 (lane-dense per-row scalar path).
    x3 = jax.random.normal(jax.random.PRNGKey(2), (4, 128, 128), dtype=jnp.float32)
    x3 = 0.3 * x3 / jnp.linalg.norm(x3, axis=-1, keepdims=True)
    out3 = jax.block_until_ready(hyperbolic_activation(x3, k=-1.0))
    assert jnp.allclose(out3, _reference(x3, k=-1.0), atol=1e-5, rtol=1e-5)

    # Case 4: rows that ReLU to all-zero stay finite and map to the origin.
    x4 = -0.05 * jnp.ones((8, 128), dtype=jnp.float32)
    out4 = jax.block_until_ready(hyperbolic_activation(x4, k=-1.0))
    assert bool(jnp.all(jnp.isfinite(out4))) and jnp.allclose(out4, 0.0, atol=1e-6)

    print("KERNEL_OK")
</pallas_src>

<mosaic_0001>
module attributes {stable_mosaic.version = 11 : i64} {
  func.func @_hyperbolic_act_kernel(%arg0: i32, %arg1: memref<16x128xf32, #tpu.memory_space<vmem>>, %arg2: memref<16x128xf32, #tpu.memory_space<vmem>>) attributes {dimension_semantics = [#tpu.dimension_semantics<parallel>], iteration_bounds = array<i64: 1>, scalar_prefetch = 0 : i64, scratch_operands = 0 : i64, tpu.core_type = #tpu.core_type<tc>, window_params = [{transform_indices = @transform_0, window_bounds = array<i64: 16, 128>}, {transform_indices = @transform_1, window_bounds = array<i64: 16, 128>}]} {
    %c0 = arith.constant 0 : index
    %c0_0 = arith.constant 0 : index
    %0 = vector.load %arg1[%c0, %c0_0] : memref<16x128xf32, #tpu.memory_space<vmem>>, vector<16x128xf32>
    %cst = arith.constant 0.000000e+00 : f32
    %1 = vector.broadcast %cst : f32 to vector<16x128xf32>
    %2 = arith.maximumf %0, %1 : vector<16x128xf32>
    %3 = arith.mulf %0, %0 : vector<16x128xf32>
    %cst_1 = arith.constant dense<0.000000e+00> : vector<16xf32>
    %4 = vector.multi_reduction <add>, %3, %cst_1 [1] : vector<16x128xf32> to vector<16xf32>
    %5 = vector.shape_cast %4 : vector<16xf32> to vector<16x1xf32>
    %6 = arith.mulf %2, %2 : vector<16x128xf32>
    %cst_2 = arith.constant dense<0.000000e+00> : vector<16xf32>
    %7 = vector.multi_reduction <add>, %6, %cst_2 [1] : vector<16x128xf32> to vector<16xf32>
    %8 = vector.shape_cast %7 : vector<16xf32> to vector<16x1xf32>
    %cst_3 = arith.constant 1.000000e-30 : f32
    %9 = vector.broadcast %cst_3 : f32 to vector<16x1xf32>
    %10 = arith.maximumf %5, %9 : vector<16x1xf32>
    %cst_4 = arith.constant 1.000000e-30 : f32
    %11 = vector.broadcast %cst_4 : f32 to vector<16x1xf32>
    %12 = arith.maximumf %8, %11 : vector<16x1xf32>
    %13 = math.rsqrt %10 : vector<16x1xf32>
    %14 = math.rsqrt %12 : vector<16x1xf32>
    %15 = arith.mulf %10, %13 : vector<16x1xf32>
    %16 = arith.mulf %12, %14 : vector<16x1xf32>
    %cst_5 = arith.constant -0.999989986 : f32
    %cst_6 = arith.constant 0.999989986 : f32
    %17 = vector.broadcast %cst_5 : f32 to vector<16x1xf32>
    %18 = arith.maximumf %17, %15 : vector<16x1xf32>
    %19 = vector.broadcast %cst_6 : f32 to vector<16x1xf32>
    %20 = arith.minimumf %19, %18 : vector<16x1xf32>
    %cst_7 = arith.constant 1.000000e+00 : f32
    %21 = vector.broadcast %cst_7 : f32 to vector<16x1xf32>
    %22 = arith.addf %21, %20 : vector<16x1xf32>
    %cst_8 = arith.constant 1.000000e+00 : f32
    %23 = vector.broadcast %cst_8 : f32 to vector<16x1xf32>
    %24 = arith.subf %23, %20 : vector<16x1xf32>
    %25 = arith.divf %22, %24 : vector<16x1xf32>
    %26 = math.log %25 : vector<16x1xf32>
    %cst_9 = arith.constant 5.000000e-01 : f32
    %27 = vector.broadcast %cst_9 : f32 to vector<16x1xf32>
    %28 = arith.mulf %27, %26 : vector<16x1xf32>
    %29 = arith.mulf %13, %16 : vector<16x1xf32>
    %30 = arith.mulf %28, %29 : vector<16x1xf32>
    %31 = math.tanh %30 : vector<16x1xf32>
    %32 = arith.mulf %31, %14 : vector<16x1xf32>
    %33 = vector.broadcast %32 : vector<16x1xf32> to vector<16x128xf32>
    %34 = arith.mulf %2, %33 : vector<16x128xf32>
    %c0_10 = arith.constant 0 : index
    %c0_11 = arith.constant 0 : index
    %35 = vector.load %arg2[%c0_10, %c0_11] : memref<16x128xf32, #tpu.memory_space<vmem>>, vector<16x128xf32>
    tpu.vector_store %arg2[%c0_10, %c0_11], %34 {strides = array<i32>} : memref<16x128xf32, #tpu.memory_space<vmem>>, vector<16x128xf32>,
    return
  }
  func.func @transform_0(%arg0: i32) -> (i32, i32) {
    %c0_i32 = arith.constant 0 : i32
    %c0_i32_0 = arith.constant 0 : i32
    return %arg0, %c0_i32 : i32, i32
  }
  func.func @transform_1(%arg0: i32) -> (i32, i32) {
    %c0_i32 = arith.constant 0 : i32
    %c0_i32_0 = arith.constant 0 : i32
    return %arg0, %c0_i32 : i32, i32
  }
}

</mosaic_0001>

<llo_original>
// kernel: tpu_custom_call.1
$region0: #{tpu_custom_call.1}
  #allocation0 [shape = 'u32[]', space=smem, size = 0x4, offset = 0x4, fixed_abs, tag = 'smem constant byte address 0x4 - core index']
  #allocation1 [shape = 'u32[144,128]{1,0:T(1,128)}', space=vmem, size = 0x12000, scoped, tag = 'internal scratch']
  %s0 = inlined_call_operand.hbm [shape: f32[16,128], index: 0, kind: input, shape index: {}]
  %s1 = inlined_call_operand.hbm [shape: f32[16,128], index: 1, kind: output, shape index: {}]
  %s2 = sld [smem:[#allocation0]]
  $region18: #{tpu_custom_call.1} parent=0
    _
  %s4 = ssub.s32 1, %s2
  %s5 = scalar_select 0, %s4, %s2
  $region1: #{tpu_custom_call.1} parent=0
    #allocation2 [shape = 'u8[8192]{0}', space=vmem, size = 0x2000, scoped, tag = 'input window, operand 0, single buffered']
    #allocation3 [shape = 's32[1]{0}', space=sflag, size = 0x4, scoped, tag = 'scoped memory for tpu_custom_call.1']
    #allocation4 [shape = 's32[1]{0}', space=sflag, size = 0x4, scoped, tag = 'scoped memory for tpu_custom_call.1']
    #allocation5 [shape = 'u8[8192]{0}', space=vmem, size = 0x2000, scoped, tag = 'output window, operand 0, single buffered']
    %6 = vsyncpa [#allocation3], 0
    %7 = vsyncpa [#allocation4], 0
    // Predicated region
    $region2: #{tpu_custom_call.1} parent=1 // pred_check
      _
    $region3: #{tpu_custom_call.1} parent=1 // pred_check_branch
      %9 = sbr.rel (0) target = $region5
    $region4: #{tpu_custom_call.1} parent=1 // pred_region
      %s11 = ssub.s32 256, 256
      %12 = vsyncadd [#allocation3], %s11
      %s13 = sshll.u32 [#allocation2], 4
      %s14 = int_to_ptr.vmem [resolvable:$true] %s13
      %19 = dma.hbm_to_vmem [thread:$0]  %s0, 256, %s14, [#allocation3], 128, 128, 8
    $region5: #{tpu_custom_call.1} parent=1 // pred_fallthru
      _
    // Predicated region
    $region6: #{tpu_custom_call.1} parent=1 // pred_check
      _
    $region7: #{tpu_custom_call.1} parent=1 // pred_check_branch
      %21 = sbr.rel (0) target = $region9
    $region8: #{tpu_custom_call.1} parent=1 // pred_region
      %22 = dma.done [#allocation3], 256
    $region9: #{tpu_custom_call.1} parent=1 // pred_fallthru
      _
    %v23 = vld [vmem:[#allocation2] sm:$0xff]
    %v24 = vld [vmem:[#allocation2 + $0x8] sm:$0xff]
    %v25 = vmax.f32 %v23, 0.0
    %v26 = vmax.f32 %v24, 0.0
    %v27 = vmul.f32 %v23, %v23
    %v28 = vmul.f32 %v24, %v24
    %29 = vadd.xlane.f32.xlu0 %v27
    %v30 = vpop.xlane.xlu0 %29
    %31 = vadd.xlane.f32.xlu0 %v28
    %v32 = vpop.xlane.xlu0 %31
    %v33 = vmul.f32 %v25, %v25
    %v34 = vmul.f32 %v26, %v26
    %35 = vadd.xlane.f32.xlu0 %v33
    %v36 = vpop.xlane.xlu0 %35
    %37 = vadd.xlane.f32.xlu0 %v34
    %v38 = vpop.xlane.xlu0 %37
    %v39 = vmax.f32 %v30, 1e-30
    %v40 = vmax.f32 %v32, 1e-30
    %v41 = vmax.f32 %v36, 1e-30
    %v42 = vmax.f32 %v38, 1e-30
    %v43 = vrsqrt.pop %v39
    %v44 = vrsqrt.pop %v40
    %v45 = vrsqrt.pop %v41
    %v46 = vrsqrt.pop %v42
    %v47 = vmul.f32 %v39, %v43
    %v48 = vmul.f32 %v40, %v44
    %v49 = vmul.f32 %v41, %v45
    %v50 = vmul.f32 %v42, %v46
    %v51 = vmax.f32 %v47, -0.99999
    %v52 = vmax.f32 %v48, -0.99999
    %v53 = vmin.f32 %v51, 0.99999
    %v54 = vmin.f32 %v52, 0.99999
    %v55 = vadd.f32 %v53, 1.0
    %v56 = vadd.f32 %v54, 1.0
    %v57 = vsub.f32 1.0, %v53
    %v58 = vsub.f32 1.0, %v54
    %v59 = vrcp.pop %v57
    %v60 = vmul.f32 %v55, %v59
    %v61 = vrcp.pop %v58
    %v62 = vmul.f32 %v56, %v61
    %v63 = vlog2.pop %v60
    %v64 = vmul.f32 %v63, 0.6931472
    %v65 = vlog2.pop %v62
    %v66 = vmul.f32 %v65, 0.6931472
    %v67 = vmul.f32 %v64, 0.5
    %v68 = vmul.f32 %v66, 0.5
    %v69 = vmul.f32 %v43, %v49
    %v70 = vmul.f32 %v44, %v50
    %v71 = vmul.f32 %v67, %v69
    %v72 = vmul.f32 %v68, %v70
    %v73 = vtanh.pop %v71
    %v74 = vtanh.pop %v72
    %v75 = vmul.f32 %v73, %v45
    %v76 = vmul.f32 %v74, %v46
    %v77 = vmul.f32 %v25, %v75
    %v78 = vmul.f32 %v26, %v76
    %79 = vst [vmem:[#allocation5] sm:$0xff] %v77
    %80 = vst [vmem:[#allocation5 + $0x8] sm:$0xff] %v78
    // Predicated region
    $region10: #{tpu_custom_call.1} parent=1 // pred_check
      _
    $region11: #{tpu_custom_call.1} parent=1 // pred_check_branch
      %82 = sbr.rel (0) target = $region13
    $region12: #{tpu_custom_call.1} parent=1 // pred_region
      %s84 = ssub.s32 256, 256
      %85 = vsyncadd [#allocation4], %s84
      %s86 = sshll.u32 [#allocation5], 4
      %s87 = int_to_ptr.vmem [resolvable:$true] %s86
      %92 = dma.vmem_to_hbm [thread:$0]  %s87, 256, %s1, [#allocation4], 128, 128, 8
    $region13: #{tpu_custom_call.1} parent=1 // pred_fallthru
      _
    // Predicated region
    $region14: #{tpu_custom_call.1} parent=1 // pred_check
      _
    $region15: #{tpu_custom_call.1} parent=1 // pred_check_branch
      %94 = sbr.rel (0) target = $region17
    $region16: #{tpu_custom_call.1} parent=1 // pred_region
      %95 = dma.done [#allocation4], 256
    $region17: #{tpu_custom_call.1} parent=1 // pred_fallthru
      _
    %96 = vsyncpa [#allocation3], 1
    %97 = vsyncpa [#allocation4], 1

</llo_original>
